<compile_context>
chip_gen: v7x
topology: tpu7x:2x2x1
jax: 0.10.0
libtpu: 0.0.40
codegen_flags: <defaults>
</compile_context>

<pallas_src>
import functools

import jax
import jax.numpy as jnp
from jax.experimental import pallas as pl
from jax.experimental.pallas import tpu as pltpu

_SUBLANE = 8  # second-to-last dim granularity


def _round_up(x, m):
    return (x + m - 1) // m * m


# ---------------------------------------------------------------------------
# Pallas kernel: full MLP on one (TB, in_dim) activation tile, params resident.
# ---------------------------------------------------------------------------
def _mlp_kernel(num_layers, x_ref, *refs):
    # refs = (w1, b1, w2, b2, ..., wL, bL, out_ref)
    out_ref = refs[-1]
    param_refs = refs[:-1]

    h = x_ref[...]                              # f32 activations
    for layer in range(num_layers):             # unrolled at trace time
        w = param_refs[2 * layer][...]
        b = param_refs[2 * layer + 1][...]      # f32 (1, out)
        # MXU in the weights' dtype (bf16 by default), f32 accumulation.
        # Bias add + nonlinearity stay f32 (v5e VPU/EUP have no bf16).
        h = jnp.dot(h.astype(w.dtype), w,
                    preferred_element_type=jnp.float32) + b
        if layer == num_layers - 1:
            h = jnp.tanh(h)                     # final layer: tanh (EUP)
        else:
            h = jnp.maximum(h, 0.0)             # hidden layers: relu (VPU)
    out_ref[...] = h.astype(out_ref.dtype)


# ---------------------------------------------------------------------------
# One-time capability / hardware queries (cached, evaluated outside any trace)
# ---------------------------------------------------------------------------
@functools.lru_cache(maxsize=None)
def _vmem_budget_bytes():
    """Chip-derived VMEM budget with ~25% headroom (fallback: v7x's 64 MiB)."""
    try:
        cap = int(pltpu.get_tpu_info().vmem_capacity_bytes)
    except Exception:
        cap = 64 << 20
    return (cap * 3) // 4


@functools.lru_cache(maxsize=None)
def _single_buffer_supported():
    """Probe whether pipeline_mode=pl.Buffered(1) (resident params) works."""
    def _copy(x_ref, o_ref):
        o_ref[...] = x_ref[...]
    try:
        fn = pl.pallas_call(
            _copy,
            out_shape=jax.ShapeDtypeStruct((16, 128), jnp.float32),
            grid=(2,),
            in_specs=[pl.BlockSpec((8, 128), lambda g: (0, 0),
                                   pipeline_mode=pl.Buffered(1))],
            out_specs=pl.BlockSpec((8, 128), lambda g: (g, 0)),
        )
        jax.block_until_ready(fn(jnp.ones((8, 128), jnp.float32)))
        return True
    except Exception:
        return False


# ---------------------------------------------------------------------------
# Forward builder (cached per static configuration) + thin Python wrapper.
# ---------------------------------------------------------------------------
@functools.lru_cache(maxsize=None)
def _build_forward(batch, dims, w_dtype_name, max_tile):
    """dims = (in_dim, h1, ..., out_dim). Returns jitted fn(x, *flat_params)."""
    num_layers = len(dims) - 1
    in_dim, out_dim = dims[0], dims[-1]
    w_itemsize = jnp.dtype(w_dtype_name).itemsize

    budget = _vmem_budget_bytes()
    single_buf = _single_buffer_supported()
    param_bufs = 1 if single_buf else 2
    param_bytes = sum(dims[i] * dims[i + 1] * w_itemsize + dims[i + 1] * 4
                      for i in range(num_layers))

    # Size the batch tile: double-buffered in/out tiles + f32 intermediates
    # of the widest layer, on top of the resident parameter footprint.
    row_bytes = 4 * (2 * in_dim + 2 * out_dim + 2 * max(dims))
    tb = max_tile
    while tb > _SUBLANE and param_bufs * param_bytes + tb * row_bytes > budget:
        tb //= 2
    tb = max(_SUBLANE, tb)
    tb = min(tb, _round_up(batch, _SUBLANE))
    if batch > 2 * _SUBLANE:
        # Guarantee >=2 grid steps so v7x's two TensorCores both get work.
        tb = min(tb, _round_up((batch + 1) // 2, _SUBLANE))
    batch_p = _round_up(batch, tb)
    grid = (batch_p // tb,)
    # TODO(synk): for architectures whose largest weight no longer fits VMEM
    # (e.g. 4096x4096 f32 on v7x's 64 MiB), add a K/N-tiled (i,j,k) grid per
    # layer instead of this all-params-resident scheme.

    param_kw = {"pipeline_mode": pl.Buffered(1)} if single_buf else {}
    in_specs = [pl.BlockSpec((tb, in_dim), lambda g: (g, 0))]
    for i in range(num_layers):
        in_specs.append(pl.BlockSpec((dims[i], dims[i + 1]),
                                     lambda g: (0, 0), **param_kw))
        in_specs.append(pl.BlockSpec((1, dims[i + 1]),
                                     lambda g: (0, 0), **param_kw))
    out_specs = pl.BlockSpec((tb, out_dim), lambda g: (g, 0))

    call = pl.pallas_call(
        functools.partial(_mlp_kernel, num_layers),
        out_shape=jax.ShapeDtypeStruct((batch_p, out_dim), jnp.float32),
        grid=grid,
        in_specs=in_specs,
        out_specs=out_specs,
        compiler_params=pltpu.CompilerParams(
            dimension_semantics=("parallel",),   # batch tiles independent
            vmem_limit_bytes=budget,
        ),
    )

    @jax.jit
    def fwd(x, *flat):
        x = x.astype(jnp.float32)
        if batch_p != batch:
            x = jnp.zeros((batch_p, in_dim), jnp.float32).at[:batch].set(x)
        return call(x, *flat)[:batch]

    return fwd


def prepare_params(params, use_bf16=True):
    """One-time conversion: W -> (in, out) in bf16 (or f32), b -> (1, out) f32.

    W is the transpose of torch.nn.Linear.weight. Call once and reuse; this
    keeps dtype casts / reshapes out of the per-step forward path.
    """
    w_dtype = jnp.bfloat16 if use_bf16 else jnp.float32
    return [(jnp.asarray(w, w_dtype), jnp.asarray(b, jnp.float32).reshape(1, -1))
            for w, b in params]


def network_critic_forward(x, prepared_params, *, max_tile=2048):
    """NetworkCritic forward. x: (batch, arch[0]) or (arch[0],)."""
    squeeze = x.ndim == 1
    if squeeze:
        x = x[None, :]
    dims = (int(x.shape[1]),) + tuple(int(w.shape[1]) for w, _ in prepared_params)
    flat = []
    for w, b in prepared_params:
        flat.extend([w, b])
    fwd = _build_forward(int(x.shape[0]), dims,
                         str(prepared_params[0][0].dtype), int(max_tile))
    out = fwd(x, *flat)
    return out[0] if squeeze else out


# ---------------------------------------------------------------------------
# Deterministic init (mimics torch.nn.Linear default U(-k, k), k=1/sqrt(fan_in))
# and a pure-JAX reference for verification.
# ---------------------------------------------------------------------------
def init_params(key, architecture):
    params = []
    for i in range(1, len(architecture)):
        fan_in, fan_out = architecture[i - 1], architecture[i]
        key, kw, kb = jax.random.split(key, 3)
        bound = 1.0 / jnp.sqrt(jnp.float32(fan_in))
        w = jax.random.uniform(kw, (fan_in, fan_out), jnp.float32, -bound, bound)
        b = jax.random.uniform(kb, (1, fan_out), jnp.float32, -bound, bound)
        params.append((w, b))
    return params


def reference_forward(x, params):
    h = x
    for i, (w, b) in enumerate(params):
        h = h @ w + b
        h = jnp.tanh(h) if i == len(params) - 1 else jnp.maximum(h, 0.0)
    return h


if __name__ == "__main__":
    # architecture = [input_dim, hidden, hidden, output_dim]
    architecture = [16, 32, 32, 8]
    batch = 8

    key = jax.random.PRNGKey(0)
    key, kx = jax.random.split(key)
    x = jax.random.normal(kx, (batch, architecture[0]), jnp.float32)
    params = init_params(key, architecture)
    ref = reference_forward(x, params)

    # Exact f32 path.
    p_f32 = prepare_params(params, use_bf16=False)
    out_f32 = jax.block_until_ready(network_critic_forward(x, p_f32))
    assert out_f32.shape == (batch, architecture[-1])
    assert jnp.allclose(out_f32, ref, atol=1e-5, rtol=1e-5), "f32 mismatch"

    # Default bf16-MXU path (halved param DMA, faster MXU on v6e/v7x).
    p_bf16 = prepare_params(params, use_bf16=True)
    out_bf16 = jax.block_until_ready(network_critic_forward(x, p_bf16))
    assert jnp.allclose(out_bf16, ref, atol=3e-2, rtol=3e-2), "bf16 mismatch"

    # Single-state usage (as in getExpValues): 1-D input in, 1-D value out.
    v = jax.block_until_ready(network_critic_forward(x[0], p_bf16))
    assert v.shape == (architecture[-1],)

    # TODO(synk): training path (eligibility traces / SGD in updateExpValues)
    # is host-side PyTorch logic, not part of forward, and is not translated.
    print("KERNEL_OK")
</pallas_src>

<mosaic_0001>
module attributes {stable_mosaic.version = 11 : i64} {
  func.func @_copy(%arg0: i32, %arg1: memref<8x128xf32, #tpu.memory_space<vmem>>, %arg2: memref<8x128xf32, #tpu.memory_space<vmem>>) attributes {dimension_semantics = [#tpu.dimension_semantics<arbitrary>], iteration_bounds = array<i64: 2>, scalar_prefetch = 0 : i64, scratch_operands = 0 : i64, tpu.core_type = #tpu.core_type<tc>, window_params = [{pipeline_mode = #tpu.pipeline_mode<synchronous>, transform_indices = @transform_0, window_bounds = array<i64: 8, 128>}, {transform_indices = @transform_1, window_bounds = array<i64: 8, 128>}]} {
    %c0 = arith.constant 0 : index
    %c0_0 = arith.constant 0 : index
    %0 = vector.load %arg1[%c0, %c0_0] : memref<8x128xf32, #tpu.memory_space<vmem>>, vector<8x128xf32>
    %c0_1 = arith.constant 0 : index
    %c0_2 = arith.constant 0 : index
    %1 = vector.load %arg2[%c0_1, %c0_2] : memref<8x128xf32, #tpu.memory_space<vmem>>, vector<8x128xf32>
    tpu.vector_store %arg2[%c0_1, %c0_2], %0 {strides = array<i32>} : memref<8x128xf32, #tpu.memory_space<vmem>>, vector<8x128xf32>,
    return
  }
  func.func @transform_0(%arg0: i32) -> (i32, i32) {
    %c0_i32 = arith.constant 0 : i32
    %c0_i32_0 = arith.constant 0 : i32
    %c0_i32_1 = arith.constant 0 : i32
    return %c0_i32, %c0_i32_0 : i32, i32
  }
  func.func @transform_1(%arg0: i32) -> (i32, i32) {
    %c0_i32 = arith.constant 0 : i32
    %c0_i32_0 = arith.constant 0 : i32
    return %arg0, %c0_i32 : i32, i32
  }
}

module attributes {stable_mosaic.version = 11 : i64} {
  func.func @_mlp_kernel(%arg0: i32, %arg1: memref<8x16xf32, #tpu.memory_space<vmem>>, %arg2: memref<16x32xf32, #tpu.memory_space<vmem>>, %arg3: memref<1x32xf32, #tpu.memory_space<vmem>>, %arg4: memref<32x32xf32, #tpu.memory_space<vmem>>, %arg5: memref<1x32xf32, #tpu.memory_space<vmem>>, %arg6: memref<32x8xf32, #tpu.memory_space<vmem>>, %arg7: memref<1x8xf32, #tpu.memory_space<vmem>>, %arg8: memref<8x8xf32, #tpu.memory_space<vmem>>) attributes {dimension_semantics = [#tpu.dimension_semantics<parallel>], iteration_bounds = array<i64: 1>, scalar_prefetch = 0 : i64, scratch_operands = 0 : i64, tpu.core_type = #tpu.core_type<tc>, window_params = [{transform_indices = @transform_0, window_bounds = array<i64: 8, 16>}, {pipeline_mode = #tpu.pipeline_mode<synchronous>, transform_indices = @transform_1, window_bounds = array<i64: 16, 32>}, {pipeline_mode = #tpu.pipeline_mode<synchronous>, transform_indices = @transform_2, window_bounds = array<i64: 1, 32>}, {pipeline_mode = #tpu.pipeline_mode<synchronous>, transform_indices = @transform_3, window_bounds = array<i64: 32, 32>}, {pipeline_mode = #tpu.pipeline_mode<synchronous>, transform_indices = @transform_4, window_bounds = array<i64: 1, 32>}, {pipeline_mode = #tpu.pipeline_mode<synchronous>, transform_indices = @transform_5, window_bounds = array<i64: 32, 8>}, {pipeline_mode = #tpu.pipeline_mode<synchronous>, transform_indices = @transform_6, window_bounds = array<i64: 1, 8>}, {transform_indices = @transform_7, window_bounds = array<i64: 8, 8>}]} {
    %c0 = arith.constant 0 : index
    %c0_0 = arith.constant 0 : index
    %0 = vector.load %arg1[%c0, %c0_0] : memref<8x16xf32, #tpu.memory_space<vmem>>, vector<8x16xf32>
    %c0_1 = arith.constant 0 : index
    %c0_2 = arith.constant 0 : index
    %1 = vector.load %arg2[%c0_1, %c0_2] : memref<16x32xf32, #tpu.memory_space<vmem>>, vector<16x32xf32>
    %c0_3 = arith.constant 0 : index
    %c0_4 = arith.constant 0 : index
    %2 = vector.load %arg3[%c0_3, %c0_4] : memref<1x32xf32, #tpu.memory_space<vmem>>, vector<1x32xf32>
    %cst = arith.constant dense<0.000000e+00> : vector<8x32xf32>
    %3 = tpu.matmul %0, %1, %cst {dimension_numbers = #tpu.dot_dimension_numbers<[1], [0], [0], [1], [0, 0, 1, 1], [], []>} : vector<8x16xf32>, vector<16x32xf32>, vector<8x32xf32> -> vector<8x32xf32>
    %4 = vector.broadcast %2 : vector<1x32xf32> to vector<8x32xf32>
    %5 = arith.addf %3, %4 : vector<8x32xf32>
    %cst_5 = arith.constant 0.000000e+00 : f32
    %6 = vector.broadcast %cst_5 : f32 to vector<8x32xf32>
    %7 = arith.maximumf %5, %6 : vector<8x32xf32>
    %c0_6 = arith.constant 0 : index
    %c0_7 = arith.constant 0 : index
    %8 = vector.load %arg4[%c0_6, %c0_7] : memref<32x32xf32, #tpu.memory_space<vmem>>, vector<32x32xf32>
    %c0_8 = arith.constant 0 : index
    %c0_9 = arith.constant 0 : index
    %9 = vector.load %arg5[%c0_8, %c0_9] : memref<1x32xf32, #tpu.memory_space<vmem>>, vector<1x32xf32>
    %cst_10 = arith.constant dense<0.000000e+00> : vector<8x32xf32>
    %10 = tpu.matmul %7, %8, %cst_10 {dimension_numbers = #tpu.dot_dimension_numbers<[1], [0], [0], [1], [0, 0, 1, 1], [], []>} : vector<8x32xf32>, vector<32x32xf32>, vector<8x32xf32> -> vector<8x32xf32>
    %11 = vector.broadcast %9 : vector<1x32xf32> to vector<8x32xf32>
    %12 = arith.addf %10, %11 : vector<8x32xf32>
    %cst_11 = arith.constant 0.000000e+00 : f32
    %13 = vector.broadcast %cst_11 : f32 to vector<8x32xf32>
    %14 = arith.maximumf %12, %13 : vector<8x32xf32>
    %c0_12 = arith.constant 0 : index
    %c0_13 = arith.constant 0 : index
    %15 = vector.load %arg6[%c0_12, %c0_13] : memref<32x8xf32, #tpu.memory_space<vmem>>, vector<32x8xf32>
    %c0_14 = arith.constant 0 : index
    %c0_15 = arith.constant 0 : index
    %16 = vector.load %arg7[%c0_14, %c0_15] : memref<1x8xf32, #tpu.memory_space<vmem>>, vector<1x8xf32>
    %cst_16 = arith.constant dense<0.000000e+00> : vector<8x8xf32>
    %17 = tpu.matmul %14, %15, %cst_16 {dimension_numbers = #tpu.dot_dimension_numbers<[1], [0], [0], [1], [0, 0, 1, 1], [], []>} : vector<8x32xf32>, vector<32x8xf32>, vector<8x8xf32> -> vector<8x8xf32>
    %18 = vector.broadcast %16 : vector<1x8xf32> to vector<8x8xf32>
    %19 = arith.addf %17, %18 : vector<8x8xf32>
    %20 = math.tanh %19 : vector<8x8xf32>
    %c0_17 = arith.constant 0 : index
    %c0_18 = arith.constant 0 : index
    %21 = vector.load %arg8[%c0_17, %c0_18] : memref<8x8xf32, #tpu.memory_space<vmem>>, vector<8x8xf32>
    tpu.vector_store %arg8[%c0_17, %c0_18], %20 {strides = array<i32>} : memref<8x8xf32, #tpu.memory_space<vmem>>, vector<8x8xf32>,
    return
  }
  func.func @transform_0(%arg0: i32) -> (i32, i32) {
    %c0_i32 = arith.constant 0 : i32
    %c0_i32_0 = arith.constant 0 : i32
    return %arg0, %c0_i32 : i32, i32
  }
  func.func @transform_1(%arg0: i32) -> (i32, i32) {
    %c0_i32 = arith.constant 0 : i32
    %c0_i32_0 = arith.constant 0 : i32
    %c0_i32_1 = arith.constant 0 : i32
    return %c0_i32, %c0_i32_0 : i32, i32
  }
  func.func @transform_2(%arg0: i32) -> (i32, i32) {
    %c0_i32 = arith.constant 0 : i32
    %c0_i32_0 = arith.constant 0 : i32
    %c0_i32_1 = arith.constant 0 : i32
    return %c0_i32, %c0_i32_0 : i32, i32
  }
  func.func @transform_3(%arg0: i32) -> (i32, i32) {
    %c0_i32 = arith.constant 0 : i32
    %c0_i32_0 = arith.constant 0 : i32
    %c0_i32_1 = arith.constant 0 : i32
    return %c0_i32, %c0_i32_0 : i32, i32
  }
  func.func @transform_4(%arg0: i32) -> (i32, i32) {
    %c0_i32 = arith.constant 0 : i32
    %c0_i32_0 = arith.constant 0 : i32
    %c0_i32_1 = arith.constant 0 : i32
    return %c0_i32, %c0_i32_0 : i32, i32
  }
  func.func @transform_5(%arg0: i32) -> (i32, i32) {
    %c0_i32 = arith.constant 0 : i32
    %c0_i32_0 = arith.constant 0 : i32
    %c0_i32_1 = arith.constant 0 : i32
    return %c0_i32, %c0_i32_0 : i32, i32
  }
  func.func @transform_6(%arg0: i32) -> (i32, i32) {
    %c0_i32 = arith.constant 0 : i32
    %c0_i32_0 = arith.constant 0 : i32
    %c0_i32_1 = arith.constant 0 : i32
    return %c0_i32, %c0_i32_0 : i32, i32
  }
  func.func @transform_7(%arg0: i32) -> (i32, i32) {
    %c0_i32 = arith.constant 0 : i32
    %c0_i32_0 = arith.constant 0 : i32
    return %arg0, %c0_i32 : i32, i32
  }
}

</mosaic_0001>

<llo_original>
// kernel: tpu_custom_call.1
$region0: #{tpu_custom_call.1}
  #allocation0 [shape = 'u32[]', space=smem, size = 0x4, offset = 0x4, fixed_abs, tag = 'smem constant byte address 0x4 - core index']
  #allocation1 [shape = 'u32[144,128]{1,0:T(1,128)}', space=vmem, size = 0x12000, scoped, tag = 'internal scratch']
  %s0 = inlined_call_operand.hbm [shape: f32[8,128], index: 0, kind: input, shape index: {}]
  %s1 = inlined_call_operand.hbm [shape: f32[16,128], index: 1, kind: output, shape index: {}]
  %s2 = sld [smem:[#allocation0]]
  $region41: #{tpu_custom_call.1} parent=0
    _
  %s4 = ssub.s32 1, %s2
  %s5 = scalar_select 0, %s4, %s2
  $region1: #{tpu_custom_call.1} parent=0
    #allocation2 [shape = 'u8[4096]{0}', space=vmem, size = 0x1000, scoped, tag = 'input window, operand 0, single buffered']
    #allocation3 [shape = 's32[2]{0}', space=sflag, size = 0x8, scoped, tag = 'scoped memory for tpu_custom_call.1']
    #allocation4 [shape = 's32[2]{0}', space=sflag, size = 0x8, scoped, tag = 'scoped memory for tpu_custom_call.1']
    #allocation5 [shape = 'u8[8192]{0}', space=vmem, size = 0x2000, scoped, tag = 'output window, operand 0']
    %6 = vsyncpa [#allocation3], 0
    %7 = vsyncpa [#allocation4], 0
    %s8 = scalar_lea.sflag [#allocation4], 1
    %9 = vsyncpa %s8, 0
    loop: start=0, step=1, limit=4
    $region2: #{tpu_custom_call.1} parent=1 // loop_pre_header
      _
    $region3: #{tpu_custom_call.1} parent=1 // loop_header
      %s11 = sphi 0, %s15
      %p12 = scmp.ge.s32.totalorder %s11, 4
      %s19 = sphi 0, %s19
      %s21 = sphi 0, %s19
      %s22 = sphi 0, %s21
      %s36 = sphi 0, %s22
      %s42 = sphi 0, %s44
      %s45 = sphi 0, %s42
      %s46 = sphi 0, %s45
      %s62 = sphi 0, %s46
    $region4: #{tpu_custom_call.1} parent=1 // loop_header_branch
      %14 = sbr.rel (%p12) target = $region8
    $region5: #{tpu_custom_call.1} parent=1 // loop_body
      %s16 = ssub.s32 %s11, 1
      %s17 = ssub.s32 %s11, 2
      %s18 = sadd.s32 %s11, 1
      %s20 = sadd.s32 %s19, 1
      %p23 = scmp.eq.s32.totalorder %s11, 1
      %p24 = scmp.ne.s32.totalorder %s19, %s21
      %p25 = scmp.eq.s32.totalorder %s11, 0
      %p26 = por %p24, %p25
      %p27 = scmp.ne.s32.totalorder %s19, %s21
      %p28 = scmp.eq.s32.totalorder %s16, 1
      %p29 = por %p27, %p28
      %p30 = scmp.ne.s32.totalorder %s21, %s22
      %p31 = scmp.eq.s32.totalorder %s16, 0
      %p32 = por %p30, %p31
      %p33 = scmp.ne.s32.totalorder %s21, %s22
      %p34 = scmp.eq.s32.totalorder %s17, 1
      %p35 = por %p33, %p34
      %p37 = scmp.ne.s32.totalorder %s22, %s36
      %p38 = scmp.eq.s32.totalorder %s17, 0
      %p39 = por %p37, %p38
      %s40 = ssub.s32 %s11, %s18
      %p41 = scmp.eq.s32.totalorder %s40, 0
      %s43 = sadd.s32 %s42, 1
      %s44 = scalar_select %p41, %s42, %s43
      %p47 = pneg %p41
      %p48 = scmp.eq.s32.totalorder %s11, 1
      %p49 = por %p47, %p48
      %p50 = scmp.ne.s32.totalorder %s42, %s45
      %p51 = scmp.eq.s32.totalorder %s11, 0
      %p52 = por %p50, %p51
      %p53 = scmp.ne.s32.totalorder %s42, %s45
      %p54 = scmp.eq.s32.totalorder %s16, 1
      %p55 = por %p53, %p54
      %p56 = scmp.ne.s32.totalorder %s45, %s46
      %p57 = scmp.eq.s32.totalorder %s16, 0
      %p58 = por %p56, %p57
      %p59 = scmp.ne.s32.totalorder %s45, %s46
      %p60 = scmp.eq.s32.totalorder %s17, 1
      %p61 = por %p59, %p60
      %p63 = scmp.ne.s32.totalorder %s46, %s62
      %p64 = scmp.eq.s32.totalorder %s17, 0
      %p65 = por %p63, %p64
      %p66 = scmp.le.s32.totalorder 1, %s11
      %p67 = scmp.lt.s32.totalorder %s11, 3
      %p68 = pnand %p66, %p67
      %p69 = pneg %p68
      // Predicated region
      $region9: #{tpu_custom_call.1} parent=5 // pred_check
        _
      $region10: #{tpu_custom_call.1} parent=5 // pred_check_branch
        %71 = sbr.rel (%p68) target = $region12
      $region11: #{tpu_custom_call.1} parent=5 // pred_region
        %s72 = ssub.s32 %s11, 1
        // Predicated region
        $region13: #{tpu_custom_call.1} parent=11 // pred_check
          %p73 = pneg %p32
        $region14: #{tpu_custom_call.1} parent=11 // pred_check_branch
          %75 = sbr.rel (%p73) target = $region16
        $region15: #{tpu_custom_call.1} parent=11 // pred_region
          %s77 = ssub.s32 128, 128
          %78 = vsyncadd [#allocation3], %s77
          %s80 = sshll.u32 [#allocation2], 4
          %s81 = int_to_ptr.vmem [resolvable:$true] %s80
          %83 = dma.hbm_to_vmem [thread:$0]  %s0, 128, %s81, [#allocation3]
        $region16: #{tpu_custom_call.1} parent=11 // pred_fallthru
          _
      $region12: #{tpu_custom_call.1} parent=5 // pred_fallthru
        _
      %p84 = scmp.lt.s32.totalorder %s11, 2
      // Predicated region
      $region17: #{tpu_custom_call.1} parent=5 // pred_check
        %p85 = pneg %p84
      $region18: #{tpu_custom_call.1} parent=5 // pred_check_branch
        %87 = sbr.rel (%p85) target = $region20
      $region19: #{tpu_custom_call.1} parent=5 // pred_region
        _
      $region20: #{tpu_custom_call.1} parent=5 // pred_fallthru
        _
      %p88 = scmp.le.s32.totalorder 1, %s11
      %p89 = scmp.lt.s32.totalorder %s11, 3
      %p90 = pnand %p88, %p89
      %p91 = pneg %p90
      // Predicated region
      $region21: #{tpu_custom_call.1} parent=5 // pred_check
        _
      $region22: #{tpu_custom_call.1} parent=5 // pred_check_branch
        %93 = sbr.rel (%p90) target = $region24
      $region23: #{tpu_custom_call.1} parent=5 // pred_region
        %s94 = ssub.s32 %s11, 1
        // Predicated region
        $region25: #{tpu_custom_call.1} parent=23 // pred_check
          %p95 = pneg %p32
        $region26: #{tpu_custom_call.1} parent=23 // pred_check_branch
          %97 = sbr.rel (%p95) target = $region28
        $region27: #{tpu_custom_call.1} parent=23 // pred_region
          %98 = dma.done [#allocation3], 128
        $region28: #{tpu_custom_call.1} parent=23 // pred_fallthru
          _
        %p99 = pneg %p32
        %p100 = pneg %p29
        %p101 = pneg %p58
        %p102 = pneg %p55
        %s103 = sand.u32 %s45, 1
        %s104 = scalar_lea.sflag [#allocation4], %s103
        %s105 = sand.u32 %s45, 1
        %s106 = smul.addr %s105, 8
        %s107 = scalar_lea.vmem [#allocation5], %s106
        %v108 = vld [vmem:[#allocation2] sm:$0xff]
        %109 = vst [vmem:[%s107] sm:$0xff] %v108
        %s110 = sand.u32 %s45, 1
        %s111 = scalar_lea.sflag [#allocation4], %s110
        %s112 = sand.u32 %s45, 1
        %s113 = smul.addr %s112, 8
        %s114 = scalar_lea.vmem [#allocation5], %s113
        // Predicated region
        $region29: #{tpu_custom_call.1} parent=23 // pred_check
          %p115 = pneg %p55
        $region30: #{tpu_custom_call.1} parent=23 // pred_check_branch
          %117 = sbr.rel (%p115) target = $region32
        $region31: #{tpu_custom_call.1} parent=23 // pred_region
          %s119 = ssub.s32 128, 128
          %120 = vsyncadd %s111, %s119
          %s121 = smul.addr %s16, 128
          %s122 = scalar_lea.hbm %s1, %s121
          %s124 = sshll.u32 %s114, 4
          %s125 = int_to_ptr.vmem [resolvable:$true] %s124
          %127 = dma.vmem_to_hbm [thread:$0]  %s125, 128, %s122, %s111
        $region32: #{tpu_custom_call.1} parent=23 // pred_fallthru
          _
      $region24: #{tpu_custom_call.1} parent=5 // pred_fallthru
        _
      %p128 = scmp.le.s32.totalorder 2, %s11
      // Predicated region
      $region33: #{tpu_custom_call.1} parent=5 // pred_check
        %p129 = pneg %p128
      $region34: #{tpu_custom_call.1} parent=5 // pred_check_branch
        %131 = sbr.rel (%p129) target = $region36
      $region35: #{tpu_custom_call.1} parent=5 // pred_region
        %s132 = ssub.s32 %s11, 2
        // Predicated region
        $region37: #{tpu_custom_call.1} parent=35 // pred_check
          %p133 = pneg %p61
        $region38: #{tpu_custom_call.1} parent=35 // pred_check_branch
          %135 = sbr.rel (%p133) target = $region40
        $region39: #{tpu_custom_call.1} parent=35 // pred_region
          %s136 = sand.u32 %s46, 1
          %s137 = scalar_lea.sflag [#allocation4], %s136
          %s138 = sand.u32 %s46, 1
          %s139 = smul.addr %s138, 8
          %s140 = scalar_lea.vmem [#allocation5], %s139
          %141 = dma.done %s137, 128
        $region40: #{tpu_custom_call.1} parent=35 // pred_fallthru
          _
      $region36: #{tpu_custom_call.1} parent=5 // pred_fallthru
        _
    $region6: #{tpu_custom_call.1} parent=1 // loop_footer
      %s15 = sadd.s32 1, %s11
    $region7: #{tpu_custom_call.1} parent=1 // loop_footer_branch
      %10 = sbr.rel target = $region3
    $region8: #{tpu_custom_call.1} parent=1 // loop_exit
      _
    %142 = vsyncpa [#allocation3], 1
    %s143 = scalar_lea.sflag [#allocation3], 1
    %144 = vsyncpa %s143, 1
    %145 = vsyncpa [#allocation4], 1
    %s146 = scalar_lea.sflag [#allocation4], 1
    %147 = vsyncpa %s146, 1

// kernel: fwd.1
$region0: #{fwd.1}
  #allocation0 [shape = 'u32[]', space=smem, size = 0x4, offset = 0x4, fixed_abs, tag = 'smem constant byte address 0x4 - core index']
  #allocation1 [shape = 'u32[144,128]{1,0:T(1,128)}', space=vmem, size = 0x12000, scoped, tag = 'internal scratch']
  %s0 = inlined_call_operand.hbm [shape: f32[8,16], index: 0, kind: input, shape index: {}]
  %s1 = inlined_call_operand.vmem [shape: f32[16,32], index: 1, kind: input, shape index: {}]
  %s2 = inlined_call_operand.vmem [shape: f32[1,32], index: 2, kind: input, shape index: {}]
  %s3 = inlined_call_operand.vmem [shape: f32[32,32], index: 3, kind: input, shape index: {}]
  %s4 = inlined_call_operand.vmem [shape: f32[1,32], index: 4, kind: input, shape index: {}]
  %s5 = inlined_call_operand.vmem [shape: f32[32,8], index: 5, kind: input, shape index: {}]
  %s6 = inlined_call_operand.vmem [shape: f32[1,8], index: 6, kind: input, shape index: {}]
  %s7 = inlined_call_operand.hbm [shape: f32[8,8], index: 7, kind: output, shape index: {}]
  %s8 = sld [smem:[#allocation0]]
  $region42: #{fwd.1} parent=0
    _
  %s10 = ssub.s32 1, %s8
  %s11 = scalar_select 0, %s10, %s8
  $region1: #{fwd.1} parent=0
    #allocation2 [shape = 'u8[4096]{0}', space=vmem, size = 0x1000, scoped, tag = 'input window, operand 0, single buffered']
    #allocation3 [shape = 's32[1]{0}', space=sflag, size = 0x4, scoped, tag = 'scoped memory for fwd.1']
    #allocation4 [shape = 's32[1]{0}', space=sflag, size = 0x4, scoped, tag = 'scoped memory for fwd.1']
    #allocation5 [shape = 'u8[4096]{0}', space=vmem, size = 0x1000, scoped, tag = 'output window, operand 0, single buffered']
    %12 = vsyncpa [#allocation3], 0
    %13 = vsyncpa [#allocation4], 0
    // Predicated region
    $region2: #{fwd.1} parent=1 // pred_check
      _
    $region3: #{fwd.1} parent=1 // pred_check_branch
      %15 = sbr.rel (0) target = $region5
    $region4: #{fwd.1} parent=1 // pred_region
      %s17 = ssub.s32 128, 128
      %18 = vsyncadd [#allocation3], %s17
      %s20 = sshll.u32 [#allocation2], 4
      %s21 = int_to_ptr.vmem [resolvable:$true] %s20
      %23 = dma.hbm_to_vmem [thread:$0]  %s0, 128, %s21, [#allocation3]
    $region5: #{fwd.1} parent=1 // pred_fallthru
      _
    // Predicated region
    $region6: #{fwd.1} parent=1 // pred_check
      _
    $region7: #{fwd.1} parent=1 // pred_check_branch
      %25 = sbr.rel (0) target = $region9
    $region8: #{fwd.1} parent=1 // pred_region
      _
    $region9: #{fwd.1} parent=1 // pred_fallthru
      _
    // Predicated region
    $region10: #{fwd.1} parent=1 // pred_check
      _
    $region11: #{fwd.1} parent=1 // pred_check_branch
      %27 = sbr.rel (0) target = $region13
    $region12: #{fwd.1} parent=1 // pred_region
      _
    $region13: #{fwd.1} parent=1 // pred_fallthru
      _
    // Predicated region
    $region14: #{fwd.1} parent=1 // pred_check
      _
    $region15: #{fwd.1} parent=1 // pred_check_branch
      %29 = sbr.rel (0) target = $region17
    $region16: #{fwd.1} parent=1 // pred_region
      _
    $region17: #{fwd.1} parent=1 // pred_fallthru
      _
    // Predicated region
    $region18: #{fwd.1} parent=1 // pred_check
      _
    $region19: #{fwd.1} parent=1 // pred_check_branch
      %31 = sbr.rel (0) target = $region21
    $region20: #{fwd.1} parent=1 // pred_region
      _
    $region21: #{fwd.1} parent=1 // pred_fallthru
      _
    // Predicated region
    $region22: #{fwd.1} parent=1 // pred_check
      _
    $region23: #{fwd.1} parent=1 // pred_check_branch
      %33 = sbr.rel (0) target = $region25
    $region24: #{fwd.1} parent=1 // pred_region
      _
    $region25: #{fwd.1} parent=1 // pred_fallthru
      _
    // Predicated region
    $region26: #{fwd.1} parent=1 // pred_check
      _
    $region27: #{fwd.1} parent=1 // pred_check_branch
      %35 = sbr.rel (0) target = $region29
    $region28: #{fwd.1} parent=1 // pred_region
      _
    $region29: #{fwd.1} parent=1 // pred_fallthru
      _
    // Predicated region
    $region30: #{fwd.1} parent=1 // pred_check
      _
    $region31: #{fwd.1} parent=1 // pred_check_branch
      %37 = sbr.rel (0) target = $region33
    $region32: #{fwd.1} parent=1 // pred_region
      %38 = dma.done [#allocation3], 128
    $region33: #{fwd.1} parent=1 // pred_fallthru
      _
    %v39 = vld [vmem:[#allocation2] sm:$0xff]
    %v40 = vld [vmem:[%s1] sm:$0xff]
    %v41 = vld [vmem:[%s1 + $0x8] sm:$0xff]
    %v42 = vld [vmem:[%s2] sm:$0x1]
    %v44 = vlaneseq
    %v45 = vshrl.u32 %v44, 7
    %v46 = vsub.s32 0, %v45
    %v47 = vrot.slane %v42, %v46
    %vm49 = vcmask 130048
    %v51 = vsel %vm49, %v39, 0
    %53 = vmatprep.subr.mxu0 0.0
    %54 = vmatpush1.msra.mxu0 %v40
    %55 = vmatprep.subr.mxu0 0.0
    %56 = vmatpush1.msra.mxu0 %v41
    %57 = vmatprep.subr.mxu0 0.0
    %58 = vmatpush1.msra.mxu0 0.0
    %59 = vmatprep.subr.mxu0 0.0
    %60 = vmatpush1.msra.mxu0 0.0
    %61 = vmatprep.subr.mxu0 0.0
    %62 = vmatpush1.msra.mxu0 0.0
    %63 = vmatprep.subr.mxu0 0.0
    %64 = vmatpush1.msra.mxu0 0.0
    %65 = vmatprep.subr.mxu0 0.0
    %66 = vmatpush1.msra.mxu0 0.0
    %67 = vmatprep.subr.mxu0 0.0
    %68 = vmatpush1.msra.mxu0 0.0
    %69 = vmatprep.subr.mxu0 0.0
    %70 = vmatpush1.msra.mxu0 0.0
    %71 = vmatprep.subr.mxu0 0.0
    %72 = vmatpush1.msra.mxu0 0.0
    %73 = vmatprep.subr.mxu0 0.0
    %74 = vmatpush1.msra.mxu0 0.0
    %75 = vmatprep.subr.mxu0 0.0
    %76 = vmatpush1.msra.mxu0 0.0
    %77 = vmatprep.subr.mxu0 0.0
    %78 = vmatpush1.msra.mxu0 0.0
    %79 = vmatprep.subr.mxu0 0.0
    %80 = vmatpush1.msra.mxu0 0.0
    %81 = vmatprep.subr.mxu0 0.0
    %82 = vmatpush1.msra.mxu0 0.0
    %83 = vmatprep.subr.mxu0 0.0
    %84 = vmatpush1.msra.mxu0 0.0
    %85 = vmatprep.subr.mxu0 0.0
    %86 = vmatpush1.msra.mxu0 0.0
    %87 = vmatprep.subr.mxu0 0.0
    %88 = vmatpush1.msra.mxu0 0.0
    %89 = vmatprep.subr.mxu0 0.0
    %90 = vmatpush1.msra.mxu0 0.0
    %91 = vmatprep.subr.mxu0 0.0
    %92 = vmatpush1.msra.mxu0 0.0
    %93 = vmatprep.subr.mxu0 0.0
    %94 = vmatpush1.msra.mxu0 0.0
    %95 = vmatprep.subr.mxu0 0.0
    %96 = vmatpush1.msra.mxu0 0.0
    %97 = vmatprep.subr.mxu0 0.0
    %98 = vmatpush1.msra.mxu0 0.0
    %99 = vmatprep.subr.mxu0 0.0
    %100 = vmatpush1.msra.mxu0 0.0
    %101 = vmatprep.subr.mxu0 0.0
    %102 = vmatpush1.msra.mxu0 0.0
    %103 = vmatprep.subr.mxu0 0.0
    %104 = vmatpush1.msra.mxu0 0.0
    %105 = vmatprep.subr.mxu0 0.0
    %106 = vmatpush1.msra.mxu0 0.0
    %107 = vmatprep.subr.mxu0 0.0
    %108 = vmatpush1.msra.mxu0 0.0
    %109 = vmatprep.subr.mxu0 0.0
    %110 = vmatpush1.msra.mxu0 0.0
    %111 = vmatprep.subr.mxu0 0.0
    %112 = vmatpush1.msra.mxu0 0.0
    %113 = vmatprep.subr.mxu0 0.0
    %114 = vmatpush1.msra.mxu0 0.0
    %115 = vmatprep.subr.mxu0 0.0
    %116 = vmatpush1.msra.mxu0 0.0
    %117 = vmatprep.mubr.f32.mxu0 0.0
    %118 = vmatmul.mubr.f32.gmra.mrb[0].mxu0 %v51
    %v119 = vpop.f32.mrb[0].mxu0
    %v120 = vadd.f32 %v47, %v119
    %v121 = vpop.f32.mrb[0].mxu0
    %122 = vdwg.mxu0
    %v123 = vmax.f32 %v120, 0.0
    %v124 = vld [vmem:[%s3] sm:$0xff]
    %v125 = vld [vmem:[%s3 + $0x8] sm:$0xff]
    %v126 = vld [vmem:[%s3 + $0x10] sm:$0xff]
    %v127 = vld [vmem:[%s3 + $0x18] sm:$0xff]
    %v128 = vld [vmem:[%s4] sm:$0x1]
    %v130 = vlaneseq
    %v131 = vshrl.u32 %v130, 7
    %v132 = vsub.s32 0, %v131
    %v133 = vrot.slane %v128, %v132
    %vm135 = vcmask 261120
    %v137 = vsel %vm135, %v123, 0
    %139 = vmatprep.subr.mxu0 0.0
    %140 = vmatpush1.msra.mxu0 %v124
    %141 = vmatprep.subr.mxu0 0.0
    %142 = vmatpush1.msra.mxu0 %v125
    %143 = vmatprep.subr.mxu0 0.0
    %144 = vmatpush1.msra.mxu0 %v126
    %145 = vmatprep.subr.mxu0 0.0
    %146 = vmatpush1.msra.mxu0 %v127
    %147 = vmatprep.subr.mxu0 0.0
    %148 = vmatpush1.msra.mxu0 0.0
    %149 = vmatprep.subr.mxu0 0.0
    %150 = vmatpush1.msra.mxu0 0.0
    %151 = vmatprep.subr.mxu0 0.0
    %152 = vmatpush1.msra.mxu0 0.0
    %153 = vmatprep.subr.mxu0 0.0
    %154 = vmatpush1.msra.mxu0 0.0
    %155 = vmatprep.subr.mxu0 0.0
    %156 = vmatpush1.msra.mxu0 0.0
    %157 = vmatprep.subr.mxu0 0.0
    %158 = vmatpush1.msra.mxu0 0.0
    %159 = vmatprep.subr.mxu0 0.0
    %160 = vmatpush1.msra.mxu0 0.0
    %161 = vmatprep.subr.mxu0 0.0
    %162 = vmatpush1.msra.mxu0 0.0
    %163 = vmatprep.subr.mxu0 0.0
    %164 = vmatpush1.msra.mxu0 0.0
    %165 = vmatprep.subr.mxu0 0.0
    %166 = vmatpush1.msra.mxu0 0.0
    %167 = vmatprep.subr.mxu0 0.0
    %168 = vmatpush1.msra.mxu0 0.0
    %169 = vmatprep.subr.mxu0 0.0
    %170 = vmatpush1.msra.mxu0 0.0
    %171 = vmatprep.subr.mxu0 0.0
    %172 = vmatpush1.msra.mxu0 0.0
    %173 = vmatprep.subr.mxu0 0.0
    %174 = vmatpush1.msra.mxu0 0.0
    %175 = vmatprep.subr.mxu0 0.0
    %176 = vmatpush1.msra.mxu0 0.0
    %177 = vmatprep.subr.mxu0 0.0
    %178 = vmatpush1.msra.mxu0 0.0
    %179 = vmatprep.subr.mxu0 0.0
    %180 = vmatpush1.msra.mxu0 0.0
    %181 = vmatprep.subr.mxu0 0.0
    %182 = vmatpush1.msra.mxu0 0.0
    %183 = vmatprep.subr.mxu0 0.0
    %184 = vmatpush1.msra.mxu0 0.0
    %185 = vmatprep.subr.mxu0 0.0
    %186 = vmatpush1.msra.mxu0 0.0
    %187 = vmatprep.subr.mxu0 0.0
    %188 = vmatpush1.msra.mxu0 0.0
    %189 = vmatprep.subr.mxu0 0.0
    %190 = vmatpush1.msra.mxu0 0.0
    %191 = vmatprep.subr.mxu0 0.0
    %192 = vmatpush1.msra.mxu0 0.0
    %193 = vmatprep.subr.mxu0 0.0
    %194 = vmatpush1.msra.mxu0 0.0
    %195 = vmatprep.subr.mxu0 0.0
    %196 = vmatpush1.msra.mxu0 0.0
    %197 = vmatprep.subr.mxu0 0.0
    %198 = vmatpush1.msra.mxu0 0.0
    %199 = vmatprep.subr.mxu0 0.0
    %200 = vmatpush1.msra.mxu0 0.0
    %201 = vmatprep.subr.mxu0 0.0
    %202 = vmatpush1.msra.mxu0 0.0
    %203 = vmatprep.mubr.f32.mxu0 0.0
    %204 = vmatmul.mubr.f32.gmra.mrb[0].mxu0 %v137
    %v205 = vpop.f32.mrb[0].mxu0
    %v206 = vadd.f32 %v133, %v205
    %v207 = vpop.f32.mrb[0].mxu0
    %208 = vdwg.mxu0
    %v209 = vmax.f32 %v206, 0.0
    %v210 = vld [vmem:[%s5] sm:$0xff]
    %v211 = vld [vmem:[%s5 + $0x8] sm:$0xff]
    %v212 = vld [vmem:[%s5 + $0x10] sm:$0xff]
    %v213 = vld [vmem:[%s5 + $0x18] sm:$0xff]
    %v214 = vld [vmem:[%s6] sm:$0x1]
    %v216 = vlaneseq
    %v217 = vshrl.u32 %v216, 7
    %v218 = vsub.s32 0, %v217
    %v219 = vrot.slane %v214, %v218
    %v222 = vsel %vm135, %v209, 0
    %224 = vmatprep.subr.mxu0 0.0
    %225 = vmatpush1.msra.mxu0 %v210
    %226 = vmatprep.subr.mxu0 0.0
    %227 = vmatpush1.msra.mxu0 %v211
    %228 = vmatprep.subr.mxu0 0.0
    %229 = vmatpush1.msra.mxu0 %v212
    %230 = vmatprep.subr.mxu0 0.0
    %231 = vmatpush1.msra.mxu0 %v213
    %232 = vmatprep.subr.mxu0 0.0
    %233 = vmatpush1.msra.mxu0 0.0
    %234 = vmatprep.subr.mxu0 0.0
    %235 = vmatpush1.msra.mxu0 0.0
    %236 = vmatprep.subr.mxu0 0.0
    %237 = vmatpush1.msra.mxu0 0.0
    %238 = vmatprep.subr.mxu0 0.0
    %239 = vmatpush1.msra.mxu0 0.0
    %240 = vmatprep.subr.mxu0 0.0
    %241 = vmatpush1.msra.mxu0 0.0
    %242 = vmatprep.subr.mxu0 0.0
    %243 = vmatpush1.msra.mxu0 0.0
    %244 = vmatprep.subr.mxu0 0.0
    %245 = vmatpush1.msra.mxu0 0.0
    %246 = vmatprep.subr.mxu0 0.0
    %247 = vmatpush1.msra.mxu0 0.0
    %248 = vmatprep.subr.mxu0 0.0
    %249 = vmatpush1.msra.mxu0 0.0
    %250 = vmatprep.subr.mxu0 0.0
    %251 = vmatpush1.msra.mxu0 0.0
    %252 = vmatprep.subr.mxu0 0.0
    %253 = vmatpush1.msra.mxu0 0.0
    %254 = vmatprep.subr.mxu0 0.0
    %255 = vmatpush1.msra.mxu0 0.0
    %256 = vmatprep.subr.mxu0 0.0
    %257 = vmatpush1.msra.mxu0 0.0
    %258 = vmatprep.subr.mxu0 0.0
    %259 = vmatpush1.msra.mxu0 0.0
    %260 = vmatprep.subr.mxu0 0.0
    %261 = vmatpush1.msra.mxu0 0.0
    %262 = vmatprep.subr.mxu0 0.0
    %263 = vmatpush1.msra.mxu0 0.0
    %264 = vmatprep.subr.mxu0 0.0
    %265 = vmatpush1.msra.mxu0 0.0
    %266 = vmatprep.subr.mxu0 0.0
    %267 = vmatpush1.msra.mxu0 0.0
    %268 = vmatprep.subr.mxu0 0.0
    %269 = vmatpush1.msra.mxu0 0.0
    %270 = vmatprep.subr.mxu0 0.0
    %271 = vmatpush1.msra.mxu0 0.0
    %272 = vmatprep.subr.mxu0 0.0
    %273 = vmatpush1.msra.mxu0 0.0
    %274 = vmatprep.subr.mxu0 0.0
    %275 = vmatpush1.msra.mxu0 0.0
    %276 = vmatprep.subr.mxu0 0.0
    %277 = vmatpush1.msra.mxu0 0.0
    %278 = vmatprep.subr.mxu0 0.0
    %279 = vmatpush1.msra.mxu0 0.0
    %280 = vmatprep.subr.mxu0 0.0
    %281 = vmatpush1.msra.mxu0 0.0
    %282 = vmatprep.subr.mxu0 0.0
    %283 = vmatpush1.msra.mxu0 0.0
    %284 = vmatprep.subr.mxu0 0.0
    %285 = vmatpush1.msra.mxu0 0.0
    %286 = vmatprep.subr.mxu0 0.0
    %287 = vmatpush1.msra.mxu0 0.0
    %288 = vmatprep.mubr.f32.mxu0 0.0
    %289 = vmatmul.mubr.f32.gmra.mrb[0].mxu0 %v222
    %v290 = vpop.f32.mrb[0].mxu0
    %v291 = vadd.f32 %v219, %v290
    %v292 = vpop.f32.mrb[0].mxu0
    %293 = vdwg.mxu0
    %v294 = vtanh.pop %v291
    %vm295 = vcmask 64512
    %296 = vst.msk [vmem:[#allocation5] sm:$0xff] %vm295, %v294
    // Predicated region
    $region34: #{fwd.1} parent=1 // pred_check
      _
    $region35: #{fwd.1} parent=1 // pred_check_branch
      %298 = sbr.rel (0) target = $region37
    $region36: #{fwd.1} parent=1 // pred_region
      %s300 = ssub.s32 128, 128
      %301 = vsyncadd [#allocation4], %s300
      %s303 = sshll.u32 [#allocation5], 4
      %s304 = int_to_ptr.vmem [resolvable:$true] %s303
      %306 = dma.vmem_to_hbm [thread:$0]  %s304, 128, %s7, [#allocation4]
    $region37: #{fwd.1} parent=1 // pred_fallthru
      _
    // Predicated region
    $region38: #{fwd.1} parent=1 // pred_check
      _
    $region39: #{fwd.1} parent=1 // pred_check_branch
      %308 = sbr.rel (0) target = $region41
    $region40: #{fwd.1} parent=1 // pred_region
      %309 = dma.done [#allocation4], 128
    $region41: #{fwd.1} parent=1 // pred_fallthru
      _
    %310 = vsyncpa [#allocation3], 1
    %311 = vsyncpa [#allocation4], 1

</llo_original>
